<compile_context>
chip_gen: v5e
topology: v5e:2x2
jax: 0.10.0
libtpu: 0.0.40
codegen_flags: <defaults>
</compile_context>

<pallas_src>
import functools

import numpy as np
import jax
import jax.numpy as jnp
from jax import lax
from jax.experimental import pallas as pl
from jax.experimental.pallas import tpu as pltpu

_REAL_MIN = 1e-30          # matches self._real_min / self._real_min_phi
_MM_DTYPE = jnp.bfloat16   # MXU operand dtype (accumulation stays f32)


def _wgaae_decoder_fused_kernel(scalars_ref, x_ref, *refs, T):
    """Fused T-layer decoder update.

    scalars_ref : SMEM (2,) f32  -> [MBratio, epsit]
    x_ref       : VMEM (V, N)    -> transposed counts X^T
    refs        : phi[0..T-1], theta[0..T-1], noise[0..T-1], phi_out[0..T-1]
    """
    phi_refs = refs[:T]
    theta_refs = refs[T:2 * T]
    noise_refs = refs[2 * T:3 * T]
    out_refs = refs[3 * T:4 * T]

    mb_ratio = scalars_ref[0]
    epsit = scalars_ref[1]

    x = x_ref[...]                                    # (V, N) f32
    for t in range(T):                                # static unroll over layers
        phi = phi_refs[t][...]                        # (V_t, K_t) f32
        theta = theta_refs[t][...]                    # (K_t, N)  f32
        noise = noise_refs[t][...]                    # (V_t, K_t) f32

        phi_mm = phi.astype(_MM_DTYPE)
        theta_mm = theta.astype(_MM_DTYPE)

        # ---- expected multinomial augmentation (mean of sampler.multi_aug) ----
        lam = jnp.dot(phi_mm, theta_mm,
                      preferred_element_type=jnp.float32)                 # (V, N)
        ratio = x / jnp.maximum(lam, _REAL_MIN)                           # (V, N)
        ratio_mm = ratio.astype(_MM_DTYPE)
        # WSZS = Phi * (R @ Theta^T): contract over N (no explicit transpose)
        wszs = phi * lax.dot_general(
            ratio_mm, theta_mm,
            dimension_numbers=(((1,), (1,)), ((), ())),
            preferred_element_type=jnp.float32)                           # (V, K)
        # Xnext = Theta * (Phi^T @ R): contract over V (no explicit transpose)
        x_next = theta * lax.dot_general(
            phi_mm, ratio_mm,
            dimension_numbers=(((0,), (0,)), ((), ())),
            preferred_element_type=jnp.float32)                           # (K, N)

        # ---- TLASGR-MCMC Phi update (first minibatch: NDot = EWSZS.sum(0)) ----
        ewszs = mb_ratio * wszs
        ndot = jnp.sum(ewszs, axis=0, keepdims=True)                      # (1, K)
        inv_ndot = pl.reciprocal(jnp.maximum(ndot, _REAL_MIN), approx=True)
        tmp = ewszs + 0.1
        tmp = inv_ndot * (tmp - jnp.sum(tmp, axis=0, keepdims=True) * phi)
        tmp1 = (2.0 * inv_ndot) * phi
        phi_prop = phi + epsit * tmp + jnp.sqrt(epsit * tmp1) * noise     # SGLD

        # ---- ProjSimplexSpecial(phi_prop, phi, epsilon=0) ----
        phinew = phi_prop - (jnp.sum(phi_prop, axis=0, keepdims=True) - 1.0) * phi
        phinew = jnp.maximum(0.0, phinew)
        phinew = phinew / jnp.maximum(
            _REAL_MIN, jnp.sum(phinew, axis=0, keepdims=True))

        out_refs[t][...] = phinew
        x = x_next                      # stays on-chip; no HBM trip between layers


@jax.jit
def _wgaae_decoder_forward(scalars, x_t, phis, thetas, noises):
    """One fused decoder forward step. Returns tuple of updated Phi arrays."""
    T = len(phis)
    kernel = functools.partial(_wgaae_decoder_fused_kernel, T=T)
    smem = lambda: pl.BlockSpec(memory_space=pltpu.MemorySpace.SMEM)
    vmem = lambda: pl.BlockSpec(memory_space=pltpu.MemorySpace.VMEM)
    out_shapes = tuple(jax.ShapeDtypeStruct(p.shape, jnp.float32) for p in phis)
    phi_new = pl.pallas_call(
        kernel,
        out_shape=out_shapes,
        in_specs=[smem(), vmem()] + [vmem() for _ in range(3 * T)],
        out_specs=tuple(vmem() for _ in range(T)),
        # reuse each phi[t]'s HBM buffer for the updated phi[t]
        input_output_aliases={2 + t: t for t in range(T)},
        compiler_params=pltpu.CompilerParams(vmem_limit_bytes=32 * 1024 * 1024),
    )(scalars, x_t, *phis, *thetas, *noises)
    return phi_new


class WGAAEDecoderPallas:
    """JAX/Pallas re-implementation of WGAAE_Decoder's forward pass."""

    def __init__(self, T, V, K_list, key):
        assert len(K_list) == T
        self.T = T
        self.V = V
        self.K = list(K_list)
        dims = [V] + list(K_list)
        phis = []
        for t in range(T):
            key, sub = jax.random.split(key)
            p = 0.2 + 0.8 * jax.random.uniform(sub, (dims[t], dims[t + 1]),
                                               dtype=jnp.float32)
            p = p / jnp.sum(p, axis=0, keepdims=True)   # column-normalized Phi init
            phis.append(p)
        self.phi = phis
        self.train_num = 0
        self.MBratio = 1

    def inital(self, n_epochs, MBratio):
        self.MBratio = MBratio
        n_updates = MBratio * n_epochs
        epsit = np.power(20 + np.linspace(1, n_updates, n_updates), -0.7)
        self._epsit = epsit / epsit[0]
        self._ForgetRate = np.power(0 + np.linspace(1, n_updates, n_updates), -0.9)

    def forward(self, x, theta, key):
        """x: (N, V) counts, theta: list of (K_t, N). Returns updated phi list."""
        x_t = jnp.transpose(x).astype(jnp.float32)     # (V, N), like np.transpose(Xt)
        # Runtime scalars (SMEM): no recompile when epsit changes each step.
        scalars = jnp.array([float(self.MBratio),
                             float(self._epsit[self.train_num])], dtype=jnp.float32)
        noises = []
        for t in range(self.T):
            key, sub = jax.random.split(key)
            noises.append(jax.random.normal(sub, self.phi[t].shape, dtype=jnp.float32))
        phi_new = _wgaae_decoder_forward(scalars, x_t, tuple(self.phi),
                                         tuple(theta), tuple(noises))
        self.phi = list(phi_new)
        self.train_num += 1
        return self.phi


if __name__ == "__main__":
    key = jax.random.PRNGKey(0)

    # Small shapes consistent with the module: T layers of a deep topic model.
    N = 8                 # batch size
    V = 32                # vocabulary size
    T = 3
    K = [16, 8, 4]        # topics per layer

    key, k_dec, k_x, k_th, k_fwd1, k_fwd2 = jax.random.split(key, 6)
    decoder = WGAAEDecoderPallas(T, V, K, k_dec)
    decoder.inital(n_epochs=2, MBratio=4)

    # Bag-of-words style non-negative integer counts (deterministic).
    x = jnp.floor(5.0 * jax.random.uniform(k_x, (N, V), dtype=jnp.float32))

    # Theta[t]: positive topic intensities, shape (K_t, N).
    theta = []
    for t in range(T):
        k_th, sub = jax.random.split(k_th)
        theta.append(0.1 + jax.random.uniform(sub, (K[t], N), dtype=jnp.float32))

    # Two training steps: epsit changes between them but the fused kernel is
    # compiled once (epsit is a runtime SMEM scalar, not a baked constant).
    decoder.forward(x, theta, k_fwd1)
    phi_out = decoder.forward(x, theta, k_fwd2)
    phi_out = [jax.block_until_ready(p) for p in phi_out]

    # Sanity: each Phi column lies on the simplex and values are finite.
    dims = [V] + K
    for t, p in enumerate(phi_out):
        assert p.shape == (dims[t], K[t])
        assert bool(jnp.all(jnp.isfinite(p)))
        assert bool(jnp.all(p >= 0.0))
        assert bool(jnp.all(jnp.abs(jnp.sum(p, axis=0) - 1.0) < 1e-3))

    print("KERNEL_OK")
</pallas_src>

<mosaic_0001>
module attributes {stable_mosaic.version = 11 : i64} {
  func.func @_wgaae_decoder_fused_kernel(%arg0: memref<2xf32, #tpu.memory_space<smem>>, %arg1: memref<32x8xf32, #tpu.memory_space<vmem>>, %arg2: memref<32x16xf32, #tpu.memory_space<vmem>>, %arg3: memref<16x8xf32, #tpu.memory_space<vmem>>, %arg4: memref<8x4xf32, #tpu.memory_space<vmem>>, %arg5: memref<16x8xf32, #tpu.memory_space<vmem>>, %arg6: memref<8x8xf32, #tpu.memory_space<vmem>>, %arg7: memref<4x8xf32, #tpu.memory_space<vmem>>, %arg8: memref<32x16xf32, #tpu.memory_space<vmem>>, %arg9: memref<16x8xf32, #tpu.memory_space<vmem>>, %arg10: memref<8x4xf32, #tpu.memory_space<vmem>>, %arg11: memref<32x16xf32, #tpu.memory_space<vmem>>, %arg12: memref<16x8xf32, #tpu.memory_space<vmem>>, %arg13: memref<8x4xf32, #tpu.memory_space<vmem>>) attributes {dimension_semantics = [], scalar_prefetch = 0 : i64, scratch_operands = 0 : i64, tpu.core_type = #tpu.core_type<tc>} {
    %c0 = arith.constant 0 : index
    %0 = memref.load %arg0[%c0] : memref<2xf32, #tpu.memory_space<smem>>
    %c1 = arith.constant 1 : index
    %1 = memref.load %arg0[%c1] : memref<2xf32, #tpu.memory_space<smem>>
    %c0_0 = arith.constant 0 : index
    %c0_1 = arith.constant 0 : index
    %2 = vector.load %arg1[%c0_0, %c0_1] : memref<32x8xf32, #tpu.memory_space<vmem>>, vector<32x8xf32>
    %c0_2 = arith.constant 0 : index
    %c0_3 = arith.constant 0 : index
    %3 = vector.load %arg2[%c0_2, %c0_3] : memref<32x16xf32, #tpu.memory_space<vmem>>, vector<32x16xf32>
    %c0_4 = arith.constant 0 : index
    %c0_5 = arith.constant 0 : index
    %4 = vector.load %arg5[%c0_4, %c0_5] : memref<16x8xf32, #tpu.memory_space<vmem>>, vector<16x8xf32>
    %c0_6 = arith.constant 0 : index
    %c0_7 = arith.constant 0 : index
    %5 = vector.load %arg8[%c0_6, %c0_7] : memref<32x16xf32, #tpu.memory_space<vmem>>, vector<32x16xf32>
    %6 = arith.truncf %3 : vector<32x16xf32> to vector<32x16xbf16>
    %7 = arith.truncf %4 : vector<16x8xf32> to vector<16x8xbf16>
    %cst = arith.constant dense<0.000000e+00> : vector<32x8xf32>
    %8 = tpu.matmul %6, %7, %cst {dimension_numbers = #tpu.dot_dimension_numbers<[1], [0], [0], [1], [0, 0, 1, 1], [], []>} : vector<32x16xbf16>, vector<16x8xbf16>, vector<32x8xf32> -> vector<32x8xf32>
    %cst_8 = arith.constant 1.000000e-30 : f32
    %9 = vector.broadcast %cst_8 : f32 to vector<32x8xf32>
    %10 = arith.maximumf %8, %9 : vector<32x8xf32>
    %11 = arith.divf %2, %10 : vector<32x8xf32>
    %12 = arith.truncf %11 : vector<32x8xf32> to vector<32x8xbf16>
    %cst_9 = arith.constant dense<0.000000e+00> : vector<32x16xf32>
    %13 = tpu.matmul %12, %7, %cst_9 {dimension_numbers = #tpu.dot_dimension_numbers<[1], [1], [0], [0], [0, 0, 1, 0], [], []>} : vector<32x8xbf16>, vector<16x8xbf16>, vector<32x16xf32> -> vector<32x16xf32>
    %14 = arith.mulf %3, %13 : vector<32x16xf32>
    %cst_10 = arith.constant dense<0.000000e+00> : vector<16x8xf32>
    %15 = tpu.matmul %6, %12, %cst_10 {dimension_numbers = #tpu.dot_dimension_numbers<[0], [0], [1], [1], [0, 1, 1, 1], [], []>} : vector<32x16xbf16>, vector<32x8xbf16>, vector<16x8xf32> -> vector<16x8xf32>
    %16 = arith.mulf %4, %15 : vector<16x8xf32>
    %17 = vector.broadcast %0 : f32 to vector<32x16xf32>
    %18 = arith.mulf %17, %14 : vector<32x16xf32>
    %cst_11 = arith.constant dense<0.000000e+00> : vector<16xf32>
    %19 = vector.multi_reduction <add>, %18, %cst_11 [0] : vector<32x16xf32> to vector<16xf32>
    %20 = vector.shape_cast %19 : vector<16xf32> to vector<1x16xf32>
    %cst_12 = arith.constant 1.000000e-30 : f32
    %21 = vector.broadcast %cst_12 : f32 to vector<1x16xf32>
    %22 = arith.maximumf %20, %21 : vector<1x16xf32>
    %23 = tpu.reciprocal %22 {approx = true} : vector<1x16xf32> -> vector<1x16xf32>
    %cst_13 = arith.constant 1.000000e-01 : f32
    %24 = vector.broadcast %cst_13 : f32 to vector<32x16xf32>
    %25 = arith.addf %18, %24 : vector<32x16xf32>
    %cst_14 = arith.constant dense<0.000000e+00> : vector<16xf32>
    %26 = vector.multi_reduction <add>, %25, %cst_14 [0] : vector<32x16xf32> to vector<16xf32>
    %27 = vector.shape_cast %26 : vector<16xf32> to vector<1x16xf32>
    %28 = vector.broadcast %27 : vector<1x16xf32> to vector<32x16xf32>
    %29 = arith.mulf %28, %3 : vector<32x16xf32>
    %30 = arith.subf %25, %29 : vector<32x16xf32>
    %31 = vector.broadcast %23 : vector<1x16xf32> to vector<32x16xf32>
    %32 = arith.mulf %31, %30 : vector<32x16xf32>
    %cst_15 = arith.constant 2.000000e+00 : f32
    %33 = vector.broadcast %cst_15 : f32 to vector<1x16xf32>
    %34 = arith.mulf %33, %23 : vector<1x16xf32>
    %35 = vector.broadcast %34 : vector<1x16xf32> to vector<32x16xf32>
    %36 = arith.mulf %35, %3 : vector<32x16xf32>
    %37 = vector.broadcast %1 : f32 to vector<32x16xf32>
    %38 = arith.mulf %37, %32 : vector<32x16xf32>
    %39 = arith.addf %3, %38 : vector<32x16xf32>
    %40 = vector.broadcast %1 : f32 to vector<32x16xf32>
    %41 = arith.mulf %40, %36 : vector<32x16xf32>
    %42 = math.sqrt %41 : vector<32x16xf32>
    %43 = arith.mulf %42, %5 : vector<32x16xf32>
    %44 = arith.addf %39, %43 : vector<32x16xf32>
    %cst_16 = arith.constant dense<0.000000e+00> : vector<16xf32>
    %45 = vector.multi_reduction <add>, %44, %cst_16 [0] : vector<32x16xf32> to vector<16xf32>
    %46 = vector.shape_cast %45 : vector<16xf32> to vector<1x16xf32>
    %cst_17 = arith.constant 1.000000e+00 : f32
    %47 = vector.broadcast %cst_17 : f32 to vector<1x16xf32>
    %48 = arith.subf %46, %47 : vector<1x16xf32>
    %49 = vector.broadcast %48 : vector<1x16xf32> to vector<32x16xf32>
    %50 = arith.mulf %49, %3 : vector<32x16xf32>
    %51 = arith.subf %44, %50 : vector<32x16xf32>
    %cst_18 = arith.constant 0.000000e+00 : f32
    %52 = vector.broadcast %cst_18 : f32 to vector<32x16xf32>
    %53 = arith.maximumf %52, %51 : vector<32x16xf32>
    %cst_19 = arith.constant dense<0.000000e+00> : vector<16xf32>
    %54 = vector.multi_reduction <add>, %53, %cst_19 [0] : vector<32x16xf32> to vector<16xf32>
    %55 = vector.shape_cast %54 : vector<16xf32> to vector<1x16xf32>
    %cst_20 = arith.constant 1.000000e-30 : f32
    %56 = vector.broadcast %cst_20 : f32 to vector<1x16xf32>
    %57 = arith.maximumf %56, %55 : vector<1x16xf32>
    %58 = vector.broadcast %57 : vector<1x16xf32> to vector<32x16xf32>
    %59 = arith.divf %53, %58 : vector<32x16xf32>
    %c0_21 = arith.constant 0 : index
    %c0_22 = arith.constant 0 : index
    %60 = vector.load %arg11[%c0_21, %c0_22] : memref<32x16xf32, #tpu.memory_space<vmem>>, vector<32x16xf32>
    tpu.vector_store %arg11[%c0_21, %c0_22], %59 {strides = array<i32>} : memref<32x16xf32, #tpu.memory_space<vmem>>, vector<32x16xf32>,
    %c0_23 = arith.constant 0 : index
    %c0_24 = arith.constant 0 : index
    %61 = vector.load %arg3[%c0_23, %c0_24] : memref<16x8xf32, #tpu.memory_space<vmem>>, vector<16x8xf32>
    %c0_25 = arith.constant 0 : index
    %c0_26 = arith.constant 0 : index
    %62 = vector.load %arg6[%c0_25, %c0_26] : memref<8x8xf32, #tpu.memory_space<vmem>>, vector<8x8xf32>
    %c0_27 = arith.constant 0 : index
    %c0_28 = arith.constant 0 : index
    %63 = vector.load %arg9[%c0_27, %c0_28] : memref<16x8xf32, #tpu.memory_space<vmem>>, vector<16x8xf32>
    %64 = arith.truncf %61 : vector<16x8xf32> to vector<16x8xbf16>
    %65 = arith.truncf %62 : vector<8x8xf32> to vector<8x8xbf16>
    %cst_29 = arith.constant dense<0.000000e+00> : vector<16x8xf32>
    %66 = tpu.matmul %64, %65, %cst_29 {dimension_numbers = #tpu.dot_dimension_numbers<[1], [0], [0], [1], [0, 0, 1, 1], [], []>} : vector<16x8xbf16>, vector<8x8xbf16>, vector<16x8xf32> -> vector<16x8xf32>
    %cst_30 = arith.constant 1.000000e-30 : f32
    %67 = vector.broadcast %cst_30 : f32 to vector<16x8xf32>
    %68 = arith.maximumf %66, %67 : vector<16x8xf32>
    %69 = arith.divf %16, %68 : vector<16x8xf32>
    %70 = arith.truncf %69 : vector<16x8xf32> to vector<16x8xbf16>
    %cst_31 = arith.constant dense<0.000000e+00> : vector<16x8xf32>
    %71 = tpu.matmul %70, %65, %cst_31 {dimension_numbers = #tpu.dot_dimension_numbers<[1], [1], [0], [0], [0, 0, 1, 0], [], []>} : vector<16x8xbf16>, vector<8x8xbf16>, vector<16x8xf32> -> vector<16x8xf32>
    %72 = arith.mulf %61, %71 : vector<16x8xf32>
    %cst_32 = arith.constant dense<0.000000e+00> : vector<8x8xf32>
    %73 = tpu.matmul %64, %70, %cst_32 {dimension_numbers = #tpu.dot_dimension_numbers<[0], [0], [1], [1], [0, 1, 1, 1], [], []>} : vector<16x8xbf16>, vector<16x8xbf16>, vector<8x8xf32> -> vector<8x8xf32>
    %74 = arith.mulf %62, %73 : vector<8x8xf32>
    %75 = vector.broadcast %0 : f32 to vector<16x8xf32>
    %76 = arith.mulf %75, %72 : vector<16x8xf32>
    %cst_33 = arith.constant dense<0.000000e+00> : vector<8xf32>
    %77 = vector.multi_reduction <add>, %76, %cst_33 [0] : vector<16x8xf32> to vector<8xf32>
    %78 = vector.shape_cast %77 : vector<8xf32> to vector<1x8xf32>
    %cst_34 = arith.constant 1.000000e-30 : f32
    %79 = vector.broadcast %cst_34 : f32 to vector<1x8xf32>
    %80 = arith.maximumf %78, %79 : vector<1x8xf32>
    %81 = tpu.reciprocal %80 {approx = true} : vector<1x8xf32> -> vector<1x8xf32>
    %cst_35 = arith.constant 1.000000e-01 : f32
    %82 = vector.broadcast %cst_35 : f32 to vector<16x8xf32>
    %83 = arith.addf %76, %82 : vector<16x8xf32>
    %cst_36 = arith.constant dense<0.000000e+00> : vector<8xf32>
    %84 = vector.multi_reduction <add>, %83, %cst_36 [0] : vector<16x8xf32> to vector<8xf32>
    %85 = vector.shape_cast %84 : vector<8xf32> to vector<1x8xf32>
    %86 = vector.broadcast %85 : vector<1x8xf32> to vector<16x8xf32>
    %87 = arith.mulf %86, %61 : vector<16x8xf32>
    %88 = arith.subf %83, %87 : vector<16x8xf32>
    %89 = vector.broadcast %81 : vector<1x8xf32> to vector<16x8xf32>
    %90 = arith.mulf %89, %88 : vector<16x8xf32>
    %cst_37 = arith.constant 2.000000e+00 : f32
    %91 = vector.broadcast %cst_37 : f32 to vector<1x8xf32>
    %92 = arith.mulf %91, %81 : vector<1x8xf32>
    %93 = vector.broadcast %92 : vector<1x8xf32> to vector<16x8xf32>
    %94 = arith.mulf %93, %61 : vector<16x8xf32>
    %95 = vector.broadcast %1 : f32 to vector<16x8xf32>
    %96 = arith.mulf %95, %90 : vector<16x8xf32>
    %97 = arith.addf %61, %96 : vector<16x8xf32>
    %98 = vector.broadcast %1 : f32 to vector<16x8xf32>
    %99 = arith.mulf %98, %94 : vector<16x8xf32>
    %100 = math.sqrt %99 : vector<16x8xf32>
    %101 = arith.mulf %100, %63 : vector<16x8xf32>
    %102 = arith.addf %97, %101 : vector<16x8xf32>
    %cst_38 = arith.constant dense<0.000000e+00> : vector<8xf32>
    %103 = vector.multi_reduction <add>, %102, %cst_38 [0] : vector<16x8xf32> to vector<8xf32>
    %104 = vector.shape_cast %103 : vector<8xf32> to vector<1x8xf32>
    %cst_39 = arith.constant 1.000000e+00 : f32
    %105 = vector.broadcast %cst_39 : f32 to vector<1x8xf32>
    %106 = arith.subf %104, %105 : vector<1x8xf32>
    %107 = vector.broadcast %106 : vector<1x8xf32> to vector<16x8xf32>
    %108 = arith.mulf %107, %61 : vector<16x8xf32>
    %109 = arith.subf %102, %108 : vector<16x8xf32>
    %cst_40 = arith.constant 0.000000e+00 : f32
    %110 = vector.broadcast %cst_40 : f32 to vector<16x8xf32>
    %111 = arith.maximumf %110, %109 : vector<16x8xf32>
    %cst_41 = arith.constant dense<0.000000e+00> : vector<8xf32>
    %112 = vector.multi_reduction <add>, %111, %cst_41 [0] : vector<16x8xf32> to vector<8xf32>
    %113 = vector.shape_cast %112 : vector<8xf32> to vector<1x8xf32>
    %cst_42 = arith.constant 1.000000e-30 : f32
    %114 = vector.broadcast %cst_42 : f32 to vector<1x8xf32>
    %115 = arith.maximumf %114, %113 : vector<1x8xf32>
    %116 = vector.broadcast %115 : vector<1x8xf32> to vector<16x8xf32>
    %117 = arith.divf %111, %116 : vector<16x8xf32>
    %c0_43 = arith.constant 0 : index
    %c0_44 = arith.constant 0 : index
    %118 = vector.load %arg12[%c0_43, %c0_44] : memref<16x8xf32, #tpu.memory_space<vmem>>, vector<16x8xf32>
    tpu.vector_store %arg12[%c0_43, %c0_44], %117 {strides = array<i32>} : memref<16x8xf32, #tpu.memory_space<vmem>>, vector<16x8xf32>,
    %c0_45 = arith.constant 0 : index
    %c0_46 = arith.constant 0 : index
    %119 = vector.load %arg4[%c0_45, %c0_46] : memref<8x4xf32, #tpu.memory_space<vmem>>, vector<8x4xf32>
    %c0_47 = arith.constant 0 : index
    %c0_48 = arith.constant 0 : index
    %120 = vector.load %arg7[%c0_47, %c0_48] : memref<4x8xf32, #tpu.memory_space<vmem>>, vector<4x8xf32>
    %c0_49 = arith.constant 0 : index
    %c0_50 = arith.constant 0 : index
    %121 = vector.load %arg10[%c0_49, %c0_50] : memref<8x4xf32, #tpu.memory_space<vmem>>, vector<8x4xf32>
    %122 = arith.truncf %119 : vector<8x4xf32> to vector<8x4xbf16>
    %123 = arith.truncf %120 : vector<4x8xf32> to vector<4x8xbf16>
    %cst_51 = arith.constant dense<0.000000e+00> : vector<8x8xf32>
    %124 = tpu.matmul %122, %123, %cst_51 {dimension_numbers = #tpu.dot_dimension_numbers<[1], [0], [0], [1], [0, 0, 1, 1], [], []>} : vector<8x4xbf16>, vector<4x8xbf16>, vector<8x8xf32> -> vector<8x8xf32>
    %cst_52 = arith.constant 1.000000e-30 : f32
    %125 = vector.broadcast %cst_52 : f32 to vector<8x8xf32>
    %126 = arith.maximumf %124, %125 : vector<8x8xf32>
    %127 = arith.divf %74, %126 : vector<8x8xf32>
    %128 = arith.truncf %127 : vector<8x8xf32> to vector<8x8xbf16>
    %cst_53 = arith.constant dense<0.000000e+00> : vector<8x4xf32>
    %129 = tpu.matmul %128, %123, %cst_53 {dimension_numbers = #tpu.dot_dimension_numbers<[1], [1], [0], [0], [0, 0, 1, 0], [], []>} : vector<8x8xbf16>, vector<4x8xbf16>, vector<8x4xf32> -> vector<8x4xf32>
    %130 = arith.mulf %119, %129 : vector<8x4xf32>
    %131 = vector.broadcast %0 : f32 to vector<8x4xf32>
    %132 = arith.mulf %131, %130 : vector<8x4xf32>
    %cst_54 = arith.constant dense<0.000000e+00> : vector<4xf32>
    %133 = vector.multi_reduction <add>, %132, %cst_54 [0] : vector<8x4xf32> to vector<4xf32>
    %134 = vector.shape_cast %133 : vector<4xf32> to vector<1x4xf32>
    %cst_55 = arith.constant 1.000000e-30 : f32
    %135 = vector.broadcast %cst_55 : f32 to vector<1x4xf32>
    %136 = arith.maximumf %134, %135 : vector<1x4xf32>
    %137 = tpu.reciprocal %136 {approx = true} : vector<1x4xf32> -> vector<1x4xf32>
    %cst_56 = arith.constant 1.000000e-01 : f32
    %138 = vector.broadcast %cst_56 : f32 to vector<8x4xf32>
    %139 = arith.addf %132, %138 : vector<8x4xf32>
    %cst_57 = arith.constant dense<0.000000e+00> : vector<4xf32>
    %140 = vector.multi_reduction <add>, %139, %cst_57 [0] : vector<8x4xf32> to vector<4xf32>
    %141 = vector.shape_cast %140 : vector<4xf32> to vector<1x4xf32>
    %142 = vector.broadcast %141 : vector<1x4xf32> to vector<8x4xf32>
    %143 = arith.mulf %142, %119 : vector<8x4xf32>
    %144 = arith.subf %139, %143 : vector<8x4xf32>
    %145 = vector.broadcast %137 : vector<1x4xf32> to vector<8x4xf32>
    %146 = arith.mulf %145, %144 : vector<8x4xf32>
    %cst_58 = arith.constant 2.000000e+00 : f32
    %147 = vector.broadcast %cst_58 : f32 to vector<1x4xf32>
    %148 = arith.mulf %147, %137 : vector<1x4xf32>
    %149 = vector.broadcast %148 : vector<1x4xf32> to vector<8x4xf32>
    %150 = arith.mulf %149, %119 : vector<8x4xf32>
    %151 = vector.broadcast %1 : f32 to vector<8x4xf32>
    %152 = arith.mulf %151, %146 : vector<8x4xf32>
    %153 = arith.addf %119, %152 : vector<8x4xf32>
    %154 = vector.broadcast %1 : f32 to vector<8x4xf32>
    %155 = arith.mulf %154, %150 : vector<8x4xf32>
    %156 = math.sqrt %155 : vector<8x4xf32>
    %157 = arith.mulf %156, %121 : vector<8x4xf32>
    %158 = arith.addf %153, %157 : vector<8x4xf32>
    %cst_59 = arith.constant dense<0.000000e+00> : vector<4xf32>
    %159 = vector.multi_reduction <add>, %158, %cst_59 [0] : vector<8x4xf32> to vector<4xf32>
    %160 = vector.shape_cast %159 : vector<4xf32> to vector<1x4xf32>
    %cst_60 = arith.constant 1.000000e+00 : f32
    %161 = vector.broadcast %cst_60 : f32 to vector<1x4xf32>
    %162 = arith.subf %160, %161 : vector<1x4xf32>
    %163 = vector.broadcast %162 : vector<1x4xf32> to vector<8x4xf32>
    %164 = arith.mulf %163, %119 : vector<8x4xf32>
    %165 = arith.subf %158, %164 : vector<8x4xf32>
    %cst_61 = arith.constant 0.000000e+00 : f32
    %166 = vector.broadcast %cst_61 : f32 to vector<8x4xf32>
    %167 = arith.maximumf %166, %165 : vector<8x4xf32>
    %cst_62 = arith.constant dense<0.000000e+00> : vector<4xf32>
    %168 = vector.multi_reduction <add>, %167, %cst_62 [0] : vector<8x4xf32> to vector<4xf32>
    %169 = vector.shape_cast %168 : vector<4xf32> to vector<1x4xf32>
    %cst_63 = arith.constant 1.000000e-30 : f32
    %170 = vector.broadcast %cst_63 : f32 to vector<1x4xf32>
    %171 = arith.maximumf %170, %169 : vector<1x4xf32>
    %172 = vector.broadcast %171 : vector<1x4xf32> to vector<8x4xf32>
    %173 = arith.divf %167, %172 : vector<8x4xf32>
    %c0_64 = arith.constant 0 : index
    %c0_65 = arith.constant 0 : index
    %174 = vector.load %arg13[%c0_64, %c0_65] : memref<8x4xf32, #tpu.memory_space<vmem>>, vector<8x4xf32>
    tpu.vector_store %arg13[%c0_64, %c0_65], %173 {strides = array<i32>} : memref<8x4xf32, #tpu.memory_space<vmem>>, vector<8x4xf32>,
    return
  }
}

</mosaic_0001>

<llo_original>
// kernel: _wgaae_decoder_forward.1
$region0: #{_wgaae_decoder_forward.1}
  #allocation0 [shape = 'u32[]', space=smem, size = 0x4, offset = 0x4, fixed_abs, tag = 'smem constant byte address 0x4 - core index']
  #allocation1 [shape = 'u32[72,128]{1,0:T(1,128)}', space=vmem, size = 0x9000, scoped, tag = 'internal scratch']
  %s0 = inlined_call_operand.vmem [shape: f32[2], index: 0, kind: input, shape index: {}]
  %s1 = inlined_call_operand.vmem [shape: f32[32,8], index: 1, kind: input, shape index: {}]
  %s2 = inlined_call_operand.vmem [shape: f32[32,16], index: 2, kind: input, shape index: {}, may-alias: {2,11}]
  %s3 = inlined_call_operand.vmem [shape: f32[16,8], index: 3, kind: input, shape index: {}, may-alias: {3,12}]
  %s4 = inlined_call_operand.vmem [shape: f32[8,4], index: 4, kind: input, shape index: {}, may-alias: {4,13}]
  %s5 = inlined_call_operand.vmem [shape: f32[16,8], index: 5, kind: input, shape index: {}]
  %s6 = inlined_call_operand.vmem [shape: f32[8,8], index: 6, kind: input, shape index: {}]
  %s7 = inlined_call_operand.vmem [shape: f32[4,8], index: 7, kind: input, shape index: {}]
  %s8 = inlined_call_operand.vmem [shape: f32[32,16], index: 8, kind: input, shape index: {}]
  %s9 = inlined_call_operand.vmem [shape: f32[16,8], index: 9, kind: input, shape index: {}]
  %s10 = inlined_call_operand.vmem [shape: f32[8,4], index: 10, kind: input, shape index: {}]
  %s11 = inlined_call_operand.vmem [shape: f32[32,16], index: 11, kind: output, shape index: {0}, may-alias: {2,11}]
  %s12 = inlined_call_operand.vmem [shape: f32[16,8], index: 12, kind: output, shape index: {1}, may-alias: {3,12}]
  %s13 = inlined_call_operand.vmem [shape: f32[8,4], index: 13, kind: output, shape index: {2}, may-alias: {4,13}]
  %14 = xla_tuple %s11, %s12, %s13
  %s15 = sld [smem:[#allocation0]]
  $region74: #{_wgaae_decoder_forward.1} parent=0
    _
  %s17 = ssub.s32 1, %s15
  %s18 = scalar_select 0, %s17, %s15
  $region1: #{_wgaae_decoder_forward.1} parent=0
    #allocation2 [shape = 'u8[512]{0}', space=smem, size = 0x200, scoped, tag = 'input window, operand 0, single buffered']
    #allocation3 [shape = 's32[1]{0}', space=sflag, size = 0x4, scoped, tag = 'scoped memory for _wgaae_decoder_forward.1']
    %19 = vsyncpa [#allocation3], 0
    // Predicated region
    $region2: #{_wgaae_decoder_forward.1} parent=1 // pred_check
      _
    $region3: #{_wgaae_decoder_forward.1} parent=1 // pred_check_branch
      %21 = sbr.rel (0) target = $region5
    $region4: #{_wgaae_decoder_forward.1} parent=1 // pred_region
      %23 = vsyncadd [#allocation3], 0
      %s25 = sshll.u32 %s0, 4
      %s26 = int_to_ptr.vmem [resolvable:$true] %s25
      %28 = dma.vmem_to_smem %s26, 16, [#allocation2], [#allocation3]
    $region5: #{_wgaae_decoder_forward.1} parent=1 // pred_fallthru
      _
    // Predicated region
    $region6: #{_wgaae_decoder_forward.1} parent=1 // pred_check
      _
    $region7: #{_wgaae_decoder_forward.1} parent=1 // pred_check_branch
      %30 = sbr.rel (0) target = $region9
    $region8: #{_wgaae_decoder_forward.1} parent=1 // pred_region
      _
    $region9: #{_wgaae_decoder_forward.1} parent=1 // pred_fallthru
      _
    // Predicated region
    $region10: #{_wgaae_decoder_forward.1} parent=1 // pred_check
      _
    $region11: #{_wgaae_decoder_forward.1} parent=1 // pred_check_branch
      %32 = sbr.rel (0) target = $region13
    $region12: #{_wgaae_decoder_forward.1} parent=1 // pred_region
      _
    $region13: #{_wgaae_decoder_forward.1} parent=1 // pred_fallthru
      _
    // Predicated region
    $region14: #{_wgaae_decoder_forward.1} parent=1 // pred_check
      _
    $region15: #{_wgaae_decoder_forward.1} parent=1 // pred_check_branch
      %34 = sbr.rel (0) target = $region17
    $region16: #{_wgaae_decoder_forward.1} parent=1 // pred_region
      _
    $region17: #{_wgaae_decoder_forward.1} parent=1 // pred_fallthru
      _
    // Predicated region
    $region18: #{_wgaae_decoder_forward.1} parent=1 // pred_check
      _
    $region19: #{_wgaae_decoder_forward.1} parent=1 // pred_check_branch
      %36 = sbr.rel (0) target = $region21
    $region20: #{_wgaae_decoder_forward.1} parent=1 // pred_region
      _
    $region21: #{_wgaae_decoder_forward.1} parent=1 // pred_fallthru
      _
    // Predicated region
    $region22: #{_wgaae_decoder_forward.1} parent=1 // pred_check
      _
    $region23: #{_wgaae_decoder_forward.1} parent=1 // pred_check_branch
      %38 = sbr.rel (0) target = $region25
    $region24: #{_wgaae_decoder_forward.1} parent=1 // pred_region
      _
    $region25: #{_wgaae_decoder_forward.1} parent=1 // pred_fallthru
      _
    // Predicated region
    $region26: #{_wgaae_decoder_forward.1} parent=1 // pred_check
      _
    $region27: #{_wgaae_decoder_forward.1} parent=1 // pred_check_branch
      %40 = sbr.rel (0) target = $region29
    $region28: #{_wgaae_decoder_forward.1} parent=1 // pred_region
      _
    $region29: #{_wgaae_decoder_forward.1} parent=1 // pred_fallthru
      _
    // Predicated region
    $region30: #{_wgaae_decoder_forward.1} parent=1 // pred_check
      _
    $region31: #{_wgaae_decoder_forward.1} parent=1 // pred_check_branch
      %42 = sbr.rel (0) target = $region33
    $region32: #{_wgaae_decoder_forward.1} parent=1 // pred_region
      _
    $region33: #{_wgaae_decoder_forward.1} parent=1 // pred_fallthru
      _
    // Predicated region
    $region34: #{_wgaae_decoder_forward.1} parent=1 // pred_check
      _
    $region35: #{_wgaae_decoder_forward.1} parent=1 // pred_check_branch
      %44 = sbr.rel (0) target = $region37
    $region36: #{_wgaae_decoder_forward.1} parent=1 // pred_region
      _
    $region37: #{_wgaae_decoder_forward.1} parent=1 // pred_fallthru
      _
    // Predicated region
    $region38: #{_wgaae_decoder_forward.1} parent=1 // pred_check
      _
    $region39: #{_wgaae_decoder_forward.1} parent=1 // pred_check_branch
      %46 = sbr.rel (0) target = $region41
    $region40: #{_wgaae_decoder_forward.1} parent=1 // pred_region
      _
    $region41: #{_wgaae_decoder_forward.1} parent=1 // pred_fallthru
      _
    // Predicated region
    $region42: #{_wgaae_decoder_forward.1} parent=1 // pred_check
      _
    $region43: #{_wgaae_decoder_forward.1} parent=1 // pred_check_branch
      %48 = sbr.rel (0) target = $region45
    $region44: #{_wgaae_decoder_forward.1} parent=1 // pred_region
      _
    $region45: #{_wgaae_decoder_forward.1} parent=1 // pred_fallthru
      _
    // Predicated region
    $region46: #{_wgaae_decoder_forward.1} parent=1 // pred_check
      _
    $region47: #{_wgaae_decoder_forward.1} parent=1 // pred_check_branch
      %50 = sbr.rel (0) target = $region49
    $region48: #{_wgaae_decoder_forward.1} parent=1 // pred_region
      %52 = dma.done [#allocation3], 16
    $region49: #{_wgaae_decoder_forward.1} parent=1 // pred_fallthru
      _
    %53 = sfence
    %s55 = sld [smem:[#allocation2]]
    %s56 = sld [smem:[#allocation2 + $0x1]]
    %v57 = vld [vmem:[%s1] sm:$0xff]
    %v58 = vld [vmem:[%s1 + $0x8] sm:$0xff]
    %v59 = vld [vmem:[%s1 + $0x10] sm:$0xff]
    %v60 = vld [vmem:[%s1 + $0x18] sm:$0xff]
    %v61 = vld [vmem:[%s2] sm:$0xff]
    %v62 = vld [vmem:[%s2 + $0x8] sm:$0xff]
    %v63 = vld [vmem:[%s2 + $0x10] sm:$0xff]
    %v64 = vld [vmem:[%s2 + $0x18] sm:$0xff]
    %v65 = vld [vmem:[%s5] sm:$0xff]
    %v66 = vld [vmem:[%s5 + $0x8] sm:$0xff]
    %v67 = vld [vmem:[%s8] sm:$0xff]
    %v68 = vld [vmem:[%s8 + $0x8] sm:$0xff]
    %v69 = vld [vmem:[%s8 + $0x10] sm:$0xff]
    %v70 = vld [vmem:[%s8 + $0x18] sm:$0xff]
    %v71 = vpack.c.bf16 %v62, %v61
    %v72 = vpack.c.bf16 %v64, %v63
    %v73 = vpack.c.bf16 %v66, %v65
    %vm74 = vcmask 130048
    %v76 = vsel %vm74, %v71, 0
    %v79 = vsel %vm74, %v72, 0
    %81 = vmatpush.bf16.msra.mxu0 0
    %82 = vmatpush.bf16.msra.mxu0 0
    %83 = vmatpush.bf16.msra.mxu0 0
    %84 = vmatpush.bf16.msra.mxu0 0
    %85 = vmatpush.bf16.msra.mxu0 0
    %86 = vmatpush.bf16.msra.mxu0 0
    %87 = vmatpush.bf16.msra.mxu0 0
    %88 = vmatpush.bf16.msra.mxu0 %v73
    %89 = vmatmul.bf16.gmra.mxu0 %v76
    %v90 = vpop.f32.mrf.mxu0
    %v91 = vadd.f32 0.0, %v90
    %v92 = vpop.f32.mrf.mxu0
    %v93 = vadd.f32 0.0, %v92
    %94 = vmatmul.bf16.gmra.mxu0 %v79
    %v95 = vpop.f32.mrf.mxu0
    %v96 = vadd.f32 0.0, %v95
    %v97 = vpop.f32.mrf.mxu0
    %v98 = vadd.f32 0.0, %v97
    %99 = vdwg.mxu0
    %v100 = vmax.f32 %v91, 1e-30
    %v101 = vmax.f32 %v93, 1e-30
    %v102 = vmax.f32 %v96, 1e-30
    %v103 = vmax.f32 %v98, 1e-30
    %v104 = vrcp.pop %v100
    %v105 = vmul.f32 %v100, %v104
    %v106 = vsub.f32 1.0, %v105
    %v107 = vmul.f32 %v104, %v106
    %v108 = vadd.f32 %v104, %v107
    %vm109 = vweird.f32 %v100
    %vm110 = vweird.f32 %v104
    %vm111 = vmor %vm109, %vm110
    %v112 = vsel %vm111, %v104, %v108
    %v113 = vand.u32 2147483647, %v100
    %vm114 = vcmp.eq.f32.partialorder %v113, 8.507059e+37
    %v115 = vand.u32 %v100, 2147483648
    %v116 = vor.u32 1.1754944e-38, %v115
    %v117 = vsel %vm114, %v116, %v112
    %v118 = vmul.f32 %v57, %v117
    %v119 = vrcp.pop %v101
    %v120 = vmul.f32 %v101, %v119
    %v121 = vsub.f32 1.0, %v120
    %v122 = vmul.f32 %v119, %v121
    %v123 = vadd.f32 %v119, %v122
    %vm124 = vweird.f32 %v101
    %vm125 = vweird.f32 %v119
    %vm126 = vmor %vm124, %vm125
    %v127 = vsel %vm126, %v119, %v123
    %v128 = vand.u32 2147483647, %v101
    %vm129 = vcmp.eq.f32.partialorder %v128, 8.507059e+37
    %v130 = vand.u32 %v101, 2147483648
    %v131 = vor.u32 1.1754944e-38, %v130
    %v132 = vsel %vm129, %v131, %v127
    %v133 = vmul.f32 %v58, %v132
    %v134 = vrcp.pop %v102
    %v135 = vmul.f32 %v102, %v134
    %v136 = vsub.f32 1.0, %v135
    %v137 = vmul.f32 %v134, %v136
    %v138 = vadd.f32 %v134, %v137
    %vm139 = vweird.f32 %v102
    %vm140 = vweird.f32 %v134
    %vm141 = vmor %vm139, %vm140
    %v142 = vsel %vm141, %v134, %v138
    %v143 = vand.u32 2147483647, %v102
    %vm144 = vcmp.eq.f32.partialorder %v143, 8.507059e+37
    %v145 = vand.u32 %v102, 2147483648
    %v146 = vor.u32 1.1754944e-38, %v145
    %v147 = vsel %vm144, %v146, %v142
    %v148 = vmul.f32 %v59, %v147
    %v149 = vrcp.pop %v103
    %v150 = vmul.f32 %v103, %v149
    %v151 = vsub.f32 1.0, %v150
    %v152 = vmul.f32 %v149, %v151
    %v153 = vadd.f32 %v149, %v152
    %vm154 = vweird.f32 %v103
    %vm155 = vweird.f32 %v149
    %vm156 = vmor %vm154, %vm155
    %v157 = vsel %vm156, %v149, %v153
    %v158 = vand.u32 2147483647, %v103
    %vm159 = vcmp.eq.f32.partialorder %v158, 8.507059e+37
    %v160 = vand.u32 %v103, 2147483648
    %v161 = vor.u32 1.1754944e-38, %v160
    %v162 = vsel %vm159, %v161, %v157
    %v163 = vmul.f32 %v60, %v162
    %v164 = vpack.c.bf16 %v133, %v118
    %v165 = vpack.c.bf16 %v163, %v148
    %vm166 = vcmask 64512
    %v168 = vsel %vm166, %v164, 0
    %v171 = vsel %vm166, %v165, 0
    %v174 = vsel %vm166, %v73, 0
    %176 = vmatpush.bf16.xpose.msra.mxu0 0
    %177 = vmatpush.bf16.xpose.msra.mxu0 0
    %178 = vmatpush.bf16.xpose.msra.mxu0 0
    %179 = vmatpush.bf16.xpose.msra.mxu0 0
    %180 = vmatpush.bf16.xpose.msra.mxu0 0
    %181 = vmatpush.bf16.xpose.msra.mxu0 0
    %182 = vmatpush.bf16.xpose.msra.mxu0 0
    %183 = vmatpush.bf16.xpose.msra.mxu0 %v174
    %184 = vmatmul.bf16.gmra.mxu0 %v168
    %v185 = vpop.f32.mrf.mxu0
    %v186 = vadd.f32 0.0, %v185
    %v187 = vpop.f32.mrf.mxu0
    %v188 = vadd.f32 0.0, %v187
    %189 = vmatmul.bf16.gmra.mxu0 %v171
    %v190 = vpop.f32.mrf.mxu0
    %v191 = vadd.f32 0.0, %v190
    %v192 = vpop.f32.mrf.mxu0
    %v193 = vadd.f32 0.0, %v192
    %194 = vdwg.mxu0
    %v195 = vmul.f32 %v61, %v186
    %v196 = vmul.f32 %v62, %v188
    %v197 = vmul.f32 %v63, %v191
    %v198 = vmul.f32 %v64, %v193
    %199 = vxpose.xlu0.c.b16.start [1/8] %v71, 128
    %200 = vxpose.xlu0.c.b16.cont [2/8] %v72, 128
    %201 = vxpose.xlu0.c.b16.cont [3/8] 0, 128
    %202 = vxpose.xlu0.c.b16.cont [4/8] 0, 128
    %203 = vxpose.xlu0.c.b16.cont [5/8] 0, 128
    %204 = vxpose.xlu0.c.b16.cont [6/8] 0, 128
    %205 = vxpose.xlu0.c.b16.cont [7/8] 0, 128
    %206 = vxpose.xlu0.c.b16.end [8/8] 0, 128
    %v207 = vpop.trf.xlu0
    %v208 = vpop.trf.xlu0
    %v209 = vpop.trf.xlu0
    %v210 = vpop.trf.xlu0
    %v211 = vpop.trf.xlu0
    %v212 = vpop.trf.xlu0
    %v213 = vpop.trf.xlu0
    %v214 = vpop.trf.xlu0
    %vm215 = vcmask 261120
    %v217 = vsel %vm215, %v207, 0
    %219 = vmatpush.bf16.msra.mxu0 0
    %220 = vmatpush.bf16.msra.mxu0 0
    %221 = vmatpush.bf16.msra.mxu0 0
    %222 = vmatpush.bf16.msra.mxu0 0
    %223 = vmatpush.bf16.msra.mxu0 0
    %224 = vmatpush.bf16.msra.mxu0 0
    %225 = vmatpush.bf16.msra.mxu0 %v165
    %226 = vmatpush.bf16.msra.mxu0 %v164
    %227 = vmatmul.bf16.gmra.mxu0 %v217
    %v228 = vpop.f32.mrf.mxu0
    %v229 = vadd.f32 0.0, %v228
    %v230 = vpop.f32.mrf.mxu0
    %v231 = vadd.f32 0.0, %v230
    %232 = vdwg.mxu0
    %v233 = vmul.f32 %v65, %v229
    %v234 = vmul.f32 %v66, %v231
    %v235 = vstv %s55
    %v236 = vmul.f32 %v235, %v195
    %v237 = vmul.f32 %v235, %v196
    %v238 = vmul.f32 %v235, %v197
    %v239 = vmul.f32 %v235, %v198
    %v240 = vsel %vm74, %v236, 0.0
    %v241 = vsel %vm74, %v237, 0.0
    %v242 = vadd.f32 %v240, %v241
    %v243 = vsel %vm74, %v238, 0.0
    %v244 = vadd.f32 %v242, %v243
    %v245 = vsel %vm74, %v239, 0.0
    %v246 = vadd.f32 %v244, %v245
    %v247 = vrot.slane %v246, 4
    %v248 = vadd.f32 %v246, %v247
    %v249 = vrot.slane %v248, 2
    %v250 = vadd.f32 %v248, %v249
    %v251 = vrot.slane %v250, 1
    %v252 = vadd.f32 %v250, %v251
    %v253 = vmax.f32 %v252, 1e-30
    %v254 = vrcp.pop %v253
    %v255 = vadd.f32 %v236, 0.1
    %v256 = vadd.f32 %v237, 0.1
    %v257 = vadd.f32 %v238, 0.1
    %v258 = vadd.f32 %v239, 0.1
    %v259 = vsel %vm74, %v255, 0.0
    %v260 = vsel %vm74, %v256, 0.0
    %v261 = vadd.f32 %v259, %v260
    %v262 = vsel %vm74, %v257, 0.0
    %v263 = vadd.f32 %v261, %v262
    %v264 = vsel %vm74, %v258, 0.0
    %v265 = vadd.f32 %v263, %v264
    %v266 = vrot.slane %v265, 4
    %v267 = vadd.f32 %v265, %v266
    %v268 = vrot.slane %v267, 2
    %v269 = vadd.f32 %v267, %v268
    %v270 = vrot.slane %v269, 1
    %v271 = vadd.f32 %v269, %v270
    %v272 = vmul.f32 %v271, %v61
    %v273 = vmul.f32 %v271, %v62
    %v274 = vmul.f32 %v271, %v63
    %v275 = vmul.f32 %v271, %v64
    %v276 = vsub.f32 %v255, %v272
    %v277 = vsub.f32 %v256, %v273
    %v278 = vsub.f32 %v257, %v274
    %v279 = vsub.f32 %v258, %v275
    %v280 = vmul.f32 %v254, %v276
    %v281 = vmul.f32 %v254, %v277
    %v282 = vmul.f32 %v254, %v278
    %v283 = vmul.f32 %v254, %v279
    %v284 = vmul.f32 %v254, 2.0
    %v285 = vmul.f32 %v284, %v61
    %v286 = vmul.f32 %v284, %v62
    %v287 = vmul.f32 %v284, %v63
    %v288 = vmul.f32 %v284, %v64
    %v289 = vstv %s56
    %v290 = vmul.f32 %v289, %v280
    %v291 = vmul.f32 %v289, %v281
    %v292 = vmul.f32 %v289, %v282
    %v293 = vmul.f32 %v289, %v283
    %v294 = vadd.f32 %v61, %v290
    %v295 = vadd.f32 %v62, %v291
    %v296 = vadd.f32 %v63, %v292
    %v297 = vadd.f32 %v64, %v293
    %v298 = vmul.f32 %v289, %v285
    %v299 = vmul.f32 %v289, %v286
    %v300 = vmul.f32 %v289, %v287
    %v301 = vmul.f32 %v289, %v288
    %v302 = vrsqrt.pop %v298
    %v303 = vmul.f32 %v302, %v298
    %v304 = vmul.f32 %v303, %v302
    %v305 = vmul.f32 0.5, %v304
    %v306 = vsub.f32 1.5, %v305
    %v307 = vmul.f32 %v302, %v306
    %v308 = vmul.f32 %v298, %v307
    %vm309 = vcmp.eq.f32.partialorder %v298, inf
    %v310 = vsel %vm309, %v298, %v308
    %vm311 = vcmp.eq.f32.partialorder %v298, 0.0
    %v312 = vand.u32 %v298, 2147483648
    %v313 = vsel %vm311, %v312, %v310
    %v314 = vrsqrt.pop %v299
    %v315 = vmul.f32 %v314, %v299
    %v316 = vmul.f32 %v315, %v314
    %v317 = vmul.f32 0.5, %v316
    %v318 = vsub.f32 1.5, %v317
    %v319 = vmul.f32 %v314, %v318
    %v320 = vmul.f32 %v299, %v319
    %vm321 = vcmp.eq.f32.partialorder %v299, inf
    %v322 = vsel %vm321, %v299, %v320
    %vm323 = vcmp.eq.f32.partialorder %v299, 0.0
    %v324 = vand.u32 %v299, 2147483648
    %v325 = vsel %vm323, %v324, %v322
    %v326 = vrsqrt.pop %v300
    %v327 = vmul.f32 %v326, %v300
    %v328 = vmul.f32 %v327, %v326
    %v329 = vmul.f32 0.5, %v328
    %v330 = vsub.f32 1.5, %v329
    %v331 = vmul.f32 %v326, %v330
    %v332 = vmul.f32 %v300, %v331
    %vm333 = vcmp.eq.f32.partialorder %v300, inf
    %v334 = vsel %vm333, %v300, %v332
    %vm335 = vcmp.eq.f32.partialorder %v300, 0.0
    %v336 = vand.u32 %v300, 2147483648
    %v337 = vsel %vm335, %v336, %v334
    %v338 = vrsqrt.pop %v301
    %v339 = vmul.f32 %v338, %v301
    %v340 = vmul.f32 %v339, %v338
    %v341 = vmul.f32 0.5, %v340
    %v342 = vsub.f32 1.5, %v341
    %v343 = vmul.f32 %v338, %v342
    %v344 = vmul.f32 %v301, %v343
    %vm345 = vcmp.eq.f32.partialorder %v301, inf
    %v346 = vsel %vm345, %v301, %v344
    %vm347 = vcmp.eq.f32.partialorder %v301, 0.0
    %v348 = vand.u32 %v301, 2147483648
    %v349 = vsel %vm347, %v348, %v346
    %v350 = vmul.f32 %v313, %v67
    %v351 = vmul.f32 %v325, %v68
    %v352 = vmul.f32 %v337, %v69
    %v353 = vmul.f32 %v349, %v70
    %v354 = vadd.f32 %v294, %v350
    %v355 = vadd.f32 %v295, %v351
    %v356 = vadd.f32 %v296, %v352
    %v357 = vadd.f32 %v297, %v353
    %v358 = vsel %vm74, %v354, 0.0
    %v359 = vsel %vm74, %v355, 0.0
    %v360 = vadd.f32 %v358, %v359
    %v361 = vsel %vm74, %v356, 0.0
    %v362 = vadd.f32 %v360, %v361
    %v363 = vsel %vm74, %v357, 0.0
    %v364 = vadd.f32 %v362, %v363
    %v365 = vrot.slane %v364, 4
    %v366 = vadd.f32 %v364, %v365
    %v367 = vrot.slane %v366, 2
    %v368 = vadd.f32 %v366, %v367
    %v369 = vrot.slane %v368, 1
    %v370 = vadd.f32 %v368, %v369
    %v371 = vsub.f32 %v370, 1.0
    %v372 = vmul.f32 %v371, %v61
    %v373 = vmul.f32 %v371, %v62
    %v374 = vmul.f32 %v371, %v63
    %v375 = vmul.f32 %v371, %v64
    %v376 = vsub.f32 %v354, %v372
    %v377 = vsub.f32 %v355, %v373
    %v378 = vsub.f32 %v356, %v374
    %v379 = vsub.f32 %v357, %v375
    %v380 = vmax.f32 %v376, 0.0
    %v381 = vmax.f32 %v377, 0.0
    %v382 = vmax.f32 %v378, 0.0
    %v383 = vmax.f32 %v379, 0.0
    %v384 = vsel %vm74, %v380, 0.0
    %v385 = vsel %vm74, %v381, 0.0
    %v386 = vadd.f32 %v384, %v385
    %v387 = vsel %vm74, %v382, 0.0
    %v388 = vadd.f32 %v386, %v387
    %v389 = vsel %vm74, %v383, 0.0
    %v390 = vadd.f32 %v388, %v389
    %v391 = vrot.slane %v390, 4
    %v392 = vadd.f32 %v390, %v391
    %v393 = vrot.slane %v392, 2
    %v394 = vadd.f32 %v392, %v393
    %v395 = vrot.slane %v394, 1
    %v396 = vadd.f32 %v394, %v395
    %v397 = vmax.f32 %v396, 1e-30
    %v398 = vrcp.pop %v397
    %v399 = vmul.f32 %v397, %v398
    %v400 = vsub.f32 1.0, %v399
    %v401 = vmul.f32 %v398, %v400
    %v402 = vadd.f32 %v398, %v401
    %vm403 = vweird.f32 %v397
    %vm404 = vweird.f32 %v398
    %vm405 = vmor %vm403, %vm404
    %v406 = vsel %vm405, %v398, %v402
    %v407 = vand.u32 2147483647, %v397
    %vm408 = vcmp.eq.f32.partialorder %v407, 8.507059e+37
    %v409 = vand.u32 %v397, 2147483648
    %v410 = vor.u32 1.1754944e-38, %v409
    %v411 = vsel %vm408, %v410, %v406
    %v412 = vmul.f32 %v380, %v411
    %v413 = vmul.f32 %v381, %v411
    %v414 = vmul.f32 %v382, %v411
    %v415 = vmul.f32 %v383, %v411
    %416 = vst.msk [vmem:[%s11] sm:$0xff] %vm74, %v412
    %417 = vst.msk [vmem:[%s11 + $0x8] sm:$0xff] %vm74, %v413
    %418 = vst.msk [vmem:[%s11 + $0x10] sm:$0xff] %vm74, %v414
    %419 = vst.msk [vmem:[%s11 + $0x18] sm:$0xff] %vm74, %v415
    %v420 = vld [vmem:[%s3] sm:$0xff]
    %v421 = vld [vmem:[%s3 + $0x8] sm:$0xff]
    %v422 = vld [vmem:[%s6] sm:$0xff]
    %v423 = vld [vmem:[%s9] sm:$0xff]
    %v424 = vld [vmem:[%s9 + $0x8] sm:$0xff]
    %v425 = vpack.c.bf16 %v421, %v420
    %v426 = vpack.c.bf16 %v422, %v422
    %v428 = vsel %vm166, %v425, 0
    %vm430 = vcmask 1043456
    %v432 = vsel %vm430, %v426, 0
    %434 = vmatpush.bf16.msra.mxu0 0
    %435 = vmatpush.bf16.msra.mxu0 0
    %436 = vmatpush.bf16.msra.mxu0 0
    %437 = vmatpush.bf16.msra.mxu0 0
    %438 = vmatpush.bf16.msra.mxu0 0
    %439 = vmatpush.bf16.msra.mxu0 0
    %440 = vmatpush.bf16.msra.mxu0 0
    %441 = vmatpush.bf16.msra.mxu0 %v432
    %442 = vmatmul.bf16.gmra.mxu0 %v428
    %v443 = vpop.f32.mrf.mxu0
    %v444 = vadd.f32 0.0, %v443
    %v445 = vpop.f32.mrf.mxu0
    %v446 = vadd.f32 0.0, %v445
    %447 = vdwg.mxu0
    %v448 = vmax.f32 %v444, 1e-30
    %v449 = vmax.f32 %v446, 1e-30
    %v450 = vrcp.pop %v448
    %v451 = vmul.f32 %v448, %v450
    %v452 = vsub.f32 1.0, %v451
    %v453 = vmul.f32 %v450, %v452
    %v454 = vadd.f32 %v450, %v453
    %vm455 = vweird.f32 %v448
    %vm456 = vweird.f32 %v450
    %vm457 = vmor %vm455, %vm456
    %v458 = vsel %vm457, %v450, %v454
    %v459 = vand.u32 2147483647, %v448
    %vm460 = vcmp.eq.f32.partialorder %v459, 8.507059e+37
    %v461 = vand.u32 %v448, 2147483648
    %v462 = vor.u32 1.1754944e-38, %v461
    %v463 = vsel %vm460, %v462, %v458
    %v464 = vmul.f32 %v233, %v463
    %v465 = vrcp.pop %v449
    %v466 = vmul.f32 %v449, %v465
    %v467 = vsub.f32 1.0, %v466
    %v468 = vmul.f32 %v465, %v467
    %v469 = vadd.f32 %v465, %v468
    %vm470 = vweird.f32 %v449
    %vm471 = vweird.f32 %v465
    %vm472 = vmor %vm470, %vm471
    %v473 = vsel %vm472, %v465, %v469
    %v474 = vand.u32 2147483647, %v449
    %vm475 = vcmp.eq.f32.partialorder %v474, 8.507059e+37
    %v476 = vand.u32 %v449, 2147483648
    %v477 = vor.u32 1.1754944e-38, %v476
    %v478 = vsel %vm475, %v477, %v473
    %v479 = vmul.f32 %v234, %v478
    %v480 = vpack.c.bf16 %v479, %v464
    %v482 = vsel %vm166, %v480, 0
    %v484 = vsel %vm166, %v426, 0
    %486 = vmatpush.bf16.xpose.msra.mxu0 0
    %487 = vmatpush.bf16.xpose.msra.mxu0 0
    %488 = vmatpush.bf16.xpose.msra.mxu0 0
    %489 = vmatpush.bf16.xpose.msra.mxu0 0
    %490 = vmatpush.bf16.xpose.msra.mxu0 0
    %491 = vmatpush.bf16.xpose.msra.mxu0 0
    %492 = vmatpush.bf16.xpose.msra.mxu0 0
    %493 = vmatpush.bf16.xpose.msra.mxu0 %v484
    %494 = vmatmul.bf16.gmra.mxu0 %v482
    %v495 = vpop.f32.mrf.mxu0
    %v496 = vadd.f32 0.0, %v495
    %v497 = vpop.f32.mrf.mxu0
    %v498 = vadd.f32 0.0, %v497
    %499 = vdwg.mxu0
    %v500 = vmul.f32 %v420, %v496
    %v501 = vmul.f32 %v421, %v498
    %502 = vxpose.xlu0.c.b16.start [1/8] %v425, 128
    %503 = vxpose.xlu0.c.b16.cont [2/8] 0, 128
    %504 = vxpose.xlu0.c.b16.cont [3/8] 0, 128
    %505 = vxpose.xlu0.c.b16.cont [4/8] 0, 128
    %506 = vxpose.xlu0.c.b16.cont [5/8] 0, 128
    %507 = vxpose.xlu0.c.b16.cont [6/8] 0, 128
    %508 = vxpose.xlu0.c.b16.cont [7/8] 0, 128
    %509 = vxpose.xlu0.c.b16.end [8/8] 0, 128
    %v510 = vpop.trf.xlu0
    %v511 = vpop.trf.xlu0
    %v512 = vpop.trf.xlu0
    %v513 = vpop.trf.xlu0
    %v514 = vpop.trf.xlu0
    %v515 = vpop.trf.xlu0
    %v516 = vpop.trf.xlu0
    %v517 = vpop.trf.xlu0
    %v519 = vsel %vm74, %v510, 0
    %521 = vmatpush.bf16.msra.mxu0 0
    %522 = vmatpush.bf16.msra.mxu0 0
    %523 = vmatpush.bf16.msra.mxu0 0
    %524 = vmatpush.bf16.msra.mxu0 0
    %525 = vmatpush.bf16.msra.mxu0 0
    %526 = vmatpush.bf16.msra.mxu0 0
    %527 = vmatpush.bf16.msra.mxu0 0
    %528 = vmatpush.bf16.msra.mxu0 %v480
    %529 = vmatmul.bf16.gmra.mxu0 %v519
    %v530 = vpop.f32.mrf.mxu0
    %v531 = vadd.f32 0.0, %v530
    %v532 = vpop.f32.mrf.mxu0
    %533 = vdwg.mxu0
    %v534 = vmul.f32 %v422, %v531
    %v535 = vmul.f32 %v235, %v500
    %v536 = vmul.f32 %v235, %v501
    %v537 = vsel %vm166, %v535, 0.0
    %v538 = vsel %vm166, %v536, 0.0
    %v539 = vadd.f32 %v537, %v538
    %v540 = vrot.slane %v539, 4
    %v541 = vadd.f32 %v539, %v540
    %v542 = vrot.slane %v541, 2
    %v543 = vadd.f32 %v541, %v542
    %v544 = vrot.slane %v543, 1
    %v545 = vadd.f32 %v543, %v544
    %v546 = vmax.f32 %v545, 1e-30
    %v547 = vrcp.pop %v546
    %v548 = vadd.f32 %v535, 0.1
    %v549 = vadd.f32 %v536, 0.1
    %v550 = vsel %vm166, %v548, 0.0
    %v551 = vsel %vm166, %v549, 0.0
    %v552 = vadd.f32 %v550, %v551
    %v553 = vrot.slane %v552, 4
    %v554 = vadd.f32 %v552, %v553
    %v555 = vrot.slane %v554, 2
    %v556 = vadd.f32 %v554, %v555
    %v557 = vrot.slane %v556, 1
    %v558 = vadd.f32 %v556, %v557
    %v559 = vmul.f32 %v558, %v420
    %v560 = vmul.f32 %v558, %v421
    %v561 = vsub.f32 %v548, %v559
    %v562 = vsub.f32 %v549, %v560
    %v563 = vmul.f32 %v547, %v561
    %v564 = vmul.f32 %v547, %v562
    %v565 = vmul.f32 %v547, 2.0
    %v566 = vmul.f32 %v565, %v420
    %v567 = vmul.f32 %v565, %v421
    %v568 = vmul.f32 %v289, %v563
    %v569 = vmul.f32 %v289, %v564
    %v570 = vadd.f32 %v420, %v568
    %v571 = vadd.f32 %v421, %v569
    %v572 = vmul.f32 %v289, %v566
    %v573 = vmul.f32 %v289, %v567
    %v574 = vrsqrt.pop %v572
    %v575 = vmul.f32 %v574, %v572
    %v576 = vmul.f32 %v575, %v574
    %v577 = vmul.f32 0.5, %v576
    %v578 = vsub.f32 1.5, %v577
    %v579 = vmul.f32 %v574, %v578
    %v580 = vmul.f32 %v572, %v579
    %vm581 = vcmp.eq.f32.partialorder %v572, inf
    %v582 = vsel %vm581, %v572, %v580
    %vm583 = vcmp.eq.f32.partialorder %v572, 0.0
    %v584 = vand.u32 %v572, 2147483648
    %v585 = vsel %vm583, %v584, %v582
    %v586 = vrsqrt.pop %v573
    %v587 = vmul.f32 %v586, %v573
    %v588 = vmul.f32 %v587, %v586
    %v589 = vmul.f32 0.5, %v588
    %v590 = vsub.f32 1.5, %v589
    %v591 = vmul.f32 %v586, %v590
    %v592 = vmul.f32 %v573, %v591
    %vm593 = vcmp.eq.f32.partialorder %v573, inf
    %v594 = vsel %vm593, %v573, %v592
    %vm595 = vcmp.eq.f32.partialorder %v573, 0.0
    %v596 = vand.u32 %v573, 2147483648
    %v597 = vsel %vm595, %v596, %v594
    %v598 = vmul.f32 %v585, %v423
    %v599 = vmul.f32 %v597, %v424
    %v600 = vadd.f32 %v570, %v598
    %v601 = vadd.f32 %v571, %v599
    %v602 = vsel %vm166, %v600, 0.0
    %v603 = vsel %vm166, %v601, 0.0
    %v604 = vadd.f32 %v602, %v603
    %v605 = vrot.slane %v604, 4
    %v606 = vadd.f32 %v604, %v605
    %v607 = vrot.slane %v606, 2
    %v608 = vadd.f32 %v606, %v607
    %v609 = vrot.slane %v608, 1
    %v610 = vadd.f32 %v608, %v609
    %v611 = vsub.f32 %v610, 1.0
    %v612 = vmul.f32 %v611, %v420
    %v613 = vmul.f32 %v611, %v421
    %v614 = vsub.f32 %v600, %v612
    %v615 = vsub.f32 %v601, %v613
    %v616 = vmax.f32 %v614, 0.0
    %v617 = vmax.f32 %v615, 0.0
    %v618 = vsel %vm166, %v616, 0.0
    %v619 = vsel %vm166, %v617, 0.0
    %v620 = vadd.f32 %v618, %v619
    %v621 = vrot.slane %v620, 4
    %v622 = vadd.f32 %v620, %v621
    %v623 = vrot.slane %v622, 2
    %v624 = vadd.f32 %v622, %v623
    %v625 = vrot.slane %v624, 1
    %v626 = vadd.f32 %v624, %v625
    %v627 = vmax.f32 %v626, 1e-30
    %v628 = vrcp.pop %v627
    %v629 = vmul.f32 %v627, %v628
    %v630 = vsub.f32 1.0, %v629
    %v631 = vmul.f32 %v628, %v630
    %v632 = vadd.f32 %v628, %v631
    %vm633 = vweird.f32 %v627
    %vm634 = vweird.f32 %v628
    %vm635 = vmor %vm633, %vm634
    %v636 = vsel %vm635, %v628, %v632
    %v637 = vand.u32 2147483647, %v627
    %vm638 = vcmp.eq.f32.partialorder %v637, 8.507059e+37
    %v639 = vand.u32 %v627, 2147483648
    %v640 = vor.u32 1.1754944e-38, %v639
    %v641 = vsel %vm638, %v640, %v636
    %v642 = vmul.f32 %v616, %v641
    %v643 = vmul.f32 %v617, %v641
    %644 = vst.msk [vmem:[%s12] sm:$0xff] %vm166, %v642
    %645 = vst.msk [vmem:[%s12 + $0x8] sm:$0xff] %vm166, %v643
    %v646 = vld [vmem:[%s4] sm:$0xff]
    %v647 = vld [vmem:[%s7] sm:$0xf]
    %v648 = vld [vmem:[%s10] sm:$0xff]
    %v649 = vpack.c.bf16 %v646, %v646
    %v650 = vpack.c.bf16 %v647, %v647
    %vm651 = vcmask 31744
    %v653 = vsel %vm651, %v649, 0
    %vm655 = vcmask 1041408
    %v657 = vsel %vm655, %v650, 0
    %659 = vmatpush.bf16.msra.mxu0 0
    %660 = vmatpush.bf16.msra.mxu0 0
    %661 = vmatpush.bf16.msra.mxu0 0
    %662 = vmatpush.bf16.msra.mxu0 0
    %663 = vmatpush.bf16.msra.mxu0 0
    %664 = vmatpush.bf16.msra.mxu0 0
    %665 = vmatpush.bf16.msra.mxu0 0
    %666 = vmatpush.bf16.msra.mxu0 %v657
    %667 = vmatmul.bf16.gmra.mxu0 %v653
    %v668 = vpop.f32.mrf.mxu0
    %v669 = vadd.f32 0.0, %v668
    %v670 = vpop.f32.mrf.mxu0
    %671 = vdwg.mxu0
    %v672 = vmax.f32 %v669, 1e-30
    %v673 = vrcp.pop %v672
    %v674 = vmul.f32 %v672, %v673
    %v675 = vsub.f32 1.0, %v674
    %v676 = vmul.f32 %v673, %v675
    %v677 = vadd.f32 %v673, %v676
    %vm678 = vweird.f32 %v672
    %vm679 = vweird.f32 %v673
    %vm680 = vmor %vm678, %vm679
    %v681 = vsel %vm680, %v673, %v677
    %v682 = vand.u32 2147483647, %v672
    %vm683 = vcmp.eq.f32.partialorder %v682, 8.507059e+37
    %v684 = vand.u32 %v672, 2147483648
    %v685 = vor.u32 1.1754944e-38, %v684
    %v686 = vsel %vm683, %v685, %v681
    %v687 = vmul.f32 %v534, %v686
    %v688 = vpack.c.bf16 %v687, %v687
    %v690 = vsel %vm166, %v688, 0
    %v692 = vsel %vm166, %v650, 0
    %694 = vmatpush.bf16.xpose.msra.mxu0 0
    %695 = vmatpush.bf16.xpose.msra.mxu0 0
    %696 = vmatpush.bf16.xpose.msra.mxu0 0
    %697 = vmatpush.bf16.xpose.msra.mxu0 0
    %698 = vmatpush.bf16.xpose.msra.mxu0 0
    %699 = vmatpush.bf16.xpose.msra.mxu0 0
    %700 = vmatpush.bf16.xpose.msra.mxu0 0
    %701 = vmatpush.bf16.xpose.msra.mxu0 %v692
    %702 = vmatmul.bf16.gmra.mxu0 %v690
    %v703 = vpop.f32.mrf.mxu0
    %v704 = vadd.f32 0.0, %v703
    %v705 = vpop.f32.mrf.mxu0
    %706 = vdwg.mxu0
    %v707 = vmul.f32 %v646, %v704
    %v708 = vmul.f32 %v235, %v707
    %v709 = vsel %vm651, %v708, 0.0
    %v710 = vrot.slane %v709, 4
    %v711 = vadd.f32 %v709, %v710
    %v712 = vrot.slane %v711, 2
    %v713 = vadd.f32 %v711, %v712
    %v714 = vrot.slane %v713, 1
    %v715 = vadd.f32 %v713, %v714
    %v716 = vmax.f32 %v715, 1e-30
    %v717 = vrcp.pop %v716
    %v718 = vadd.f32 %v708, 0.1
    %v719 = vsel %vm651, %v718, 0.0
    %v720 = vrot.slane %v719, 4
    %v721 = vadd.f32 %v719, %v720
    %v722 = vrot.slane %v721, 2
    %v723 = vadd.f32 %v721, %v722
    %v724 = vrot.slane %v723, 1
    %v725 = vadd.f32 %v723, %v724
    %v726 = vmul.f32 %v725, %v646
    %v727 = vsub.f32 %v718, %v726
    %v728 = vmul.f32 %v717, %v727
    %v729 = vmul.f32 %v717, 2.0
    %v730 = vmul.f32 %v729, %v646
    %v731 = vmul.f32 %v289, %v728
    %v732 = vadd.f32 %v646, %v731
    %v733 = vmul.f32 %v289, %v730
    %v734 = vrsqrt.pop %v733
    %v735 = vmul.f32 %v734, %v733
    %v736 = vmul.f32 %v735, %v734
    %v737 = vmul.f32 0.5, %v736
    %v738 = vsub.f32 1.5, %v737
    %v739 = vmul.f32 %v734, %v738
    %v740 = vmul.f32 %v733, %v739
    %vm741 = vcmp.eq.f32.partialorder %v733, inf
    %v742 = vsel %vm741, %v733, %v740
    %vm743 = vcmp.eq.f32.partialorder %v733, 0.0
    %v744 = vand.u32 %v733, 2147483648
    %v745 = vsel %vm743, %v744, %v742
    %v746 = vmul.f32 %v745, %v648
    %v747 = vadd.f32 %v732, %v746
    %v748 = vsel %vm651, %v747, 0.0
    %v749 = vrot.slane %v748, 4
    %v750 = vadd.f32 %v748, %v749
    %v751 = vrot.slane %v750, 2
    %v752 = vadd.f32 %v750, %v751
    %v753 = vrot.slane %v752, 1
    %v754 = vadd.f32 %v752, %v753
    %v755 = vsub.f32 %v754, 1.0
    %v756 = vmul.f32 %v755, %v646
    %v757 = vsub.f32 %v747, %v756
    %v758 = vmax.f32 %v757, 0.0
    %v759 = vsel %vm651, %v758, 0.0
    %v760 = vrot.slane %v759, 4
    %v761 = vadd.f32 %v759, %v760
    %v762 = vrot.slane %v761, 2
    %v763 = vadd.f32 %v761, %v762
    %v764 = vrot.slane %v763, 1
    %v765 = vadd.f32 %v763, %v764
    %v766 = vmax.f32 %v765, 1e-30
    %v767 = vrcp.pop %v766
    %v768 = vmul.f32 %v766, %v767
    %v769 = vsub.f32 1.0, %v768
    %v770 = vmul.f32 %v767, %v769
    %v771 = vadd.f32 %v767, %v770
    %vm772 = vweird.f32 %v766
    %vm773 = vweird.f32 %v767
    %vm774 = vmor %vm772, %vm773
    %v775 = vsel %vm774, %v767, %v771
    %v776 = vand.u32 2147483647, %v766
    %vm777 = vcmp.eq.f32.partialorder %v776, 8.507059e+37
    %v778 = vand.u32 %v766, 2147483648
    %v779 = vor.u32 1.1754944e-38, %v778
    %v780 = vsel %vm777, %v779, %v775
    %v781 = vmul.f32 %v758, %v780
    %782 = vst.msk [vmem:[%s13] sm:$0xff] %vm651, %v781
    // Predicated region
    $region50: #{_wgaae_decoder_forward.1} parent=1 // pred_check
      _
    $region51: #{_wgaae_decoder_forward.1} parent=1 // pred_check_branch
      %784 = sbr.rel (0) target = $region53
    $region52: #{_wgaae_decoder_forward.1} parent=1 // pred_region
      _
    $region53: #{_wgaae_decoder_forward.1} parent=1 // pred_fallthru
      _
    // Predicated region
    $region54: #{_wgaae_decoder_forward.1} parent=1 // pred_check
      _
    $region55: #{_wgaae_decoder_forward.1} parent=1 // pred_check_branch
      %786 = sbr.rel (0) target = $region57
    $region56: #{_wgaae_decoder_forward.1} parent=1 // pred_region
      _
    $region57: #{_wgaae_decoder_forward.1} parent=1 // pred_fallthru
      _
    // Predicated region
    $region58: #{_wgaae_decoder_forward.1} parent=1 // pred_check
      _
    $region59: #{_wgaae_decoder_forward.1} parent=1 // pred_check_branch
      %788 = sbr.rel (0) target = $region61
    $region60: #{_wgaae_decoder_forward.1} parent=1 // pred_region
      _
    $region61: #{_wgaae_decoder_forward.1} parent=1 // pred_fallthru
      _
    // Predicated region
    $region62: #{_wgaae_decoder_forward.1} parent=1 // pred_check
      _
    $region63: #{_wgaae_decoder_forward.1} parent=1 // pred_check_branch
      %790 = sbr.rel (0) target = $region65
    $region64: #{_wgaae_decoder_forward.1} parent=1 // pred_region
      _
    $region65: #{_wgaae_decoder_forward.1} parent=1 // pred_fallthru
      _
    // Predicated region
    $region66: #{_wgaae_decoder_forward.1} parent=1 // pred_check
      _
    $region67: #{_wgaae_decoder_forward.1} parent=1 // pred_check_branch
      %792 = sbr.rel (0) target = $region69
    $region68: #{_wgaae_decoder_forward.1} parent=1 // pred_region
      _
    $region69: #{_wgaae_decoder_forward.1} parent=1 // pred_fallthru
      _
    // Predicated region
    $region70: #{_wgaae_decoder_forward.1} parent=1 // pred_check
      _
    $region71: #{_wgaae_decoder_forward.1} parent=1 // pred_check_branch
      %794 = sbr.rel (0) target = $region73
    $region72: #{_wgaae_decoder_forward.1} parent=1 // pred_region
      _
    $region73: #{_wgaae_decoder_forward.1} parent=1 // pred_fallthru
      _
    %795 = vsyncpa [#allocation3], 1

</llo_original>
